<compile_context>
chip_gen: v5e
topology: v5e:2x2
jax: 0.10.0
libtpu: 0.0.40
codegen_flags: <defaults>
</compile_context>

<pallas_src>
import jax
import jax.numpy as jnp
from jax.experimental import pallas as pl
from jax.experimental.pallas import tpu as pltpu  # noqa: F401  (kept for TPU-specific extensions)

_EPS = 1e-5


def _batchnorm_kernel(x_ref, gamma_ref, beta_ref, o_ref):
    # x_ref: (C, M) in input dtype; gamma/beta: (1, C) f32; o_ref: (C, M) input dtype.
    c, m = x_ref.shape
    inv_m = jnp.float32(1.0 / m)

    # Upcast for stats (v5e VPU/EUP are f32-only), then put C on the lane axis.
    xt = jnp.transpose(x_ref[...].astype(jnp.float32))          # (M, C), XLU

    # Two-pass (mean-shifted) statistics — lane-dense (1, C) per-channel vregs.
    mean = jnp.sum(xt, axis=0, keepdims=True) * inv_m            # (1, C)
    d = xt - mean                                                # sublane broadcast
    var = jnp.sum(d * d, axis=0, keepdims=True) * inv_m          # biased variance
    inv_std = jax.lax.rsqrt(var + jnp.float32(_EPS))             # ~2 EUP pushes

    # Fold affine into a single per-channel scale/shift.
    scale = gamma_ref[...] * inv_std                             # (1, C)
    shift = beta_ref[...] - mean * scale                         # (1, C)

    # One fused multiply-add per element in the lane-dense layout,
    # then transpose back so the NCHW reshape outside stays free.
    out_t = xt * scale + shift                                   # (M, C)
    o_ref[...] = jnp.transpose(out_t).astype(o_ref.dtype)        # (C, M)


def batchnorm2d_pallas(x_nchw, gamma, beta):
    """BatchNorm2d forward (training-mode batch stats) for NCHW input."""
    n, c, h, w = x_nchw.shape
    hw = h * w

    if n == 1:
        x2d = x_nchw.reshape(c, hw)                              # free reshape
    else:
        # Per-channel stats over N*H*W; the transpose is only paid when N > 1.
        x2d = jnp.transpose(x_nchw, (1, 0, 2, 3)).reshape(c, n * hw)
    m = x2d.shape[1]

    gamma2d = gamma.reshape(1, c).astype(jnp.float32)
    beta2d = beta.reshape(1, c).astype(jnp.float32)

    cost = pl.CostEstimate(
        flops=7 * c * m,
        transcendentals=c,
        bytes_accessed=2 * c * m * x2d.dtype.itemsize,
    )

    # Whole array fits easily in VMEM at this size; no grid needed.
    # (No input_output_aliases: the caller may still read x afterwards.)
    out2d = pl.pallas_call(
        _batchnorm_kernel,
        out_shape=jax.ShapeDtypeStruct((c, m), x2d.dtype),
        cost_estimate=cost,
    )(x2d, gamma2d, beta2d)

    if n == 1:
        return out2d.reshape(n, c, h, w)                         # free reshape
    return jnp.transpose(out2d.reshape(c, n, h, w), (1, 0, 2, 3))


if __name__ == "__main__":
    key = jax.random.PRNGKey(0)
    kx, kg, kb = jax.random.split(key, 3)

    # Shapes implied by the module: BatchNorm2d(232) on (1, 232, 7, 7).
    N, C, H, W = 1, 232, 7, 7
    x344 = jax.random.normal(kx, (N, C, H, W), dtype=jnp.float32)

    # Deterministic synthetic affine params.
    gamma = 1.0 + 0.1 * jax.random.normal(kg, (C,), dtype=jnp.float32)
    beta = 0.1 * jax.random.normal(kb, (C,), dtype=jnp.float32)

    x345 = batchnorm2d_pallas(x344, gamma, beta)
    jax.block_until_ready(x345)

    # Reference: torch.nn.BatchNorm2d training-mode forward (batch stats).
    mean = jnp.mean(x344, axis=(0, 2, 3), keepdims=True)
    var = jnp.mean((x344 - mean) ** 2, axis=(0, 2, 3), keepdims=True)
    ref = (x344 - mean) / jnp.sqrt(var + _EPS)
    ref = ref * gamma.reshape(1, C, 1, 1) + beta.reshape(1, C, 1, 1)
    assert jnp.allclose(x345, ref, atol=1e-4, rtol=1e-4), "mismatch vs reference"

    print("KERNEL_OK")
</pallas_src>

<mosaic_0001>
module attributes {stable_mosaic.version = 11 : i64} {
  func.func @_batchnorm_kernel(%arg0: memref<232x49xf32, #tpu.memory_space<vmem>>, %arg1: memref<1x232xf32, #tpu.memory_space<vmem>>, %arg2: memref<1x232xf32, #tpu.memory_space<vmem>>, %arg3: memref<232x49xf32, #tpu.memory_space<vmem>>) attributes {dimension_semantics = [], scalar_prefetch = 0 : i64, scratch_operands = 0 : i64, tpu.core_type = #tpu.core_type<tc>} {
    %c0 = arith.constant 0 : index
    %c0_0 = arith.constant 0 : index
    %0 = vector.load %arg0[%c0, %c0_0] : memref<232x49xf32, #tpu.memory_space<vmem>>, vector<232x49xf32>
    %1 = tpu.transpose %0, [1, 0] : vector<232x49xf32> -> vector<49x232xf32>
    %cst = arith.constant dense<0.000000e+00> : vector<232xf32>
    %2 = vector.multi_reduction <add>, %1, %cst [0] : vector<49x232xf32> to vector<232xf32>
    %3 = vector.shape_cast %2 : vector<232xf32> to vector<1x232xf32>
    %cst_1 = arith.constant 0.0204081628 : f32
    %4 = vector.broadcast %cst_1 : f32 to vector<1x232xf32>
    %5 = arith.mulf %3, %4 : vector<1x232xf32>
    %6 = vector.broadcast %5 : vector<1x232xf32> to vector<49x232xf32>
    %7 = arith.subf %1, %6 : vector<49x232xf32>
    %8 = arith.mulf %7, %7 : vector<49x232xf32>
    %cst_2 = arith.constant dense<0.000000e+00> : vector<232xf32>
    %9 = vector.multi_reduction <add>, %8, %cst_2 [0] : vector<49x232xf32> to vector<232xf32>
    %10 = vector.shape_cast %9 : vector<232xf32> to vector<1x232xf32>
    %cst_3 = arith.constant 0.0204081628 : f32
    %11 = vector.broadcast %cst_3 : f32 to vector<1x232xf32>
    %12 = arith.mulf %10, %11 : vector<1x232xf32>
    %cst_4 = arith.constant 9.99999974E-6 : f32
    %13 = vector.broadcast %cst_4 : f32 to vector<1x232xf32>
    %14 = arith.addf %12, %13 : vector<1x232xf32>
    %15 = math.rsqrt %14 : vector<1x232xf32>
    %c0_5 = arith.constant 0 : index
    %c0_6 = arith.constant 0 : index
    %16 = vector.load %arg1[%c0_5, %c0_6] : memref<1x232xf32, #tpu.memory_space<vmem>>, vector<1x232xf32>
    %17 = arith.mulf %16, %15 : vector<1x232xf32>
    %c0_7 = arith.constant 0 : index
    %c0_8 = arith.constant 0 : index
    %18 = vector.load %arg2[%c0_7, %c0_8] : memref<1x232xf32, #tpu.memory_space<vmem>>, vector<1x232xf32>
    %19 = arith.mulf %5, %17 : vector<1x232xf32>
    %20 = arith.subf %18, %19 : vector<1x232xf32>
    %21 = vector.broadcast %17 : vector<1x232xf32> to vector<49x232xf32>
    %22 = arith.mulf %1, %21 : vector<49x232xf32>
    %23 = vector.broadcast %20 : vector<1x232xf32> to vector<49x232xf32>
    %24 = arith.addf %22, %23 : vector<49x232xf32>
    %25 = tpu.transpose %24, [1, 0] : vector<49x232xf32> -> vector<232x49xf32>
    %c0_9 = arith.constant 0 : index
    %c0_10 = arith.constant 0 : index
    %26 = vector.load %arg3[%c0_9, %c0_10] : memref<232x49xf32, #tpu.memory_space<vmem>>, vector<232x49xf32>
    tpu.vector_store %arg3[%c0_9, %c0_10], %25 {strides = array<i32>} : memref<232x49xf32, #tpu.memory_space<vmem>>, vector<232x49xf32>,
    return
  }
}

</mosaic_0001>

<llo_original>
// kernel: tpu_custom_call.1
$region0: #{tpu_custom_call.1}
  #allocation0 [shape = 'u32[]', space=smem, size = 0x4, offset = 0x4, fixed_abs, tag = 'smem constant byte address 0x4 - core index']
  #allocation1 [shape = 'u32[72,128]{1,0:T(1,128)}', space=vmem, size = 0x9000, scoped, tag = 'internal scratch']
  %s0 = inlined_call_operand.vmem [shape: f32[232,49], index: 0, kind: input, shape index: {}]
  %s1 = inlined_call_operand.vmem [shape: f32[1,232], index: 1, kind: input, shape index: {}]
  %s2 = inlined_call_operand.vmem [shape: f32[1,232], index: 2, kind: input, shape index: {}]
  %s3 = inlined_call_operand.vmem [shape: f32[232,49], index: 3, kind: output, shape index: {}]
  %s4 = sld [smem:[#allocation0]]
  $region22: #{tpu_custom_call.1} parent=0
    _
  %s6 = ssub.s32 1, %s4
  %s7 = scalar_select 0, %s6, %s4
  // Predicated region
  $region2: #{tpu_custom_call.1} parent=0 // pred_check
    _
  $region3: #{tpu_custom_call.1} parent=0 // pred_check_branch
    %9 = sbr.rel (0) target = $region5
  $region4: #{tpu_custom_call.1} parent=0 // pred_region
    _
  $region5: #{tpu_custom_call.1} parent=0 // pred_fallthru
    _
  // Predicated region
  $region6: #{tpu_custom_call.1} parent=0 // pred_check
    _
  $region7: #{tpu_custom_call.1} parent=0 // pred_check_branch
    %11 = sbr.rel (0) target = $region9
  $region8: #{tpu_custom_call.1} parent=0 // pred_region
    _
  $region9: #{tpu_custom_call.1} parent=0 // pred_fallthru
    _
  // Predicated region
  $region10: #{tpu_custom_call.1} parent=0 // pred_check
    _
  $region11: #{tpu_custom_call.1} parent=0 // pred_check_branch
    %13 = sbr.rel (0) target = $region13
  $region12: #{tpu_custom_call.1} parent=0 // pred_region
    _
  $region13: #{tpu_custom_call.1} parent=0 // pred_fallthru
    _
  %v14 = vld [vmem:[%s0] sm:$0xff]
  %v15 = vld [vmem:[%s0 + $0x8] sm:$0xff]
  %v16 = vld [vmem:[%s0 + $0x10] sm:$0xff]
  %v17 = vld [vmem:[%s0 + $0x18] sm:$0xff]
  %v18 = vld [vmem:[%s0 + $0x20] sm:$0xff]
  %v19 = vld [vmem:[%s0 + $0x28] sm:$0xff]
  %v20 = vld [vmem:[%s0 + $0x30] sm:$0xff]
  %v21 = vld [vmem:[%s0 + $0x38] sm:$0xff]
  %v22 = vld [vmem:[%s0 + $0x40] sm:$0xff]
  %v23 = vld [vmem:[%s0 + $0x48] sm:$0xff]
  %v24 = vld [vmem:[%s0 + $0x50] sm:$0xff]
  %v25 = vld [vmem:[%s0 + $0x58] sm:$0xff]
  %v26 = vld [vmem:[%s0 + $0x60] sm:$0xff]
  %v27 = vld [vmem:[%s0 + $0x68] sm:$0xff]
  %v28 = vld [vmem:[%s0 + $0x70] sm:$0xff]
  %v29 = vld [vmem:[%s0 + $0x78] sm:$0xff]
  %v30 = vld [vmem:[%s0 + $0x80] sm:$0xff]
  %v31 = vld [vmem:[%s0 + $0x88] sm:$0xff]
  %v32 = vld [vmem:[%s0 + $0x90] sm:$0xff]
  %v33 = vld [vmem:[%s0 + $0x98] sm:$0xff]
  %v34 = vld [vmem:[%s0 + $0xa0] sm:$0xff]
  %v35 = vld [vmem:[%s0 + $0xa8] sm:$0xff]
  %v36 = vld [vmem:[%s0 + $0xb0] sm:$0xff]
  %v37 = vld [vmem:[%s0 + $0xb8] sm:$0xff]
  %v38 = vld [vmem:[%s0 + $0xc0] sm:$0xff]
  %v39 = vld [vmem:[%s0 + $0xc8] sm:$0xff]
  %v40 = vld [vmem:[%s0 + $0xd0] sm:$0xff]
  %v41 = vld [vmem:[%s0 + $0xd8] sm:$0xff]
  %v42 = vld [vmem:[%s0 + $0xe0] sm:$0xff]
  %43 = vxpose.xlu0.b32.start [1/16] %v14, 128
  %44 = vxpose.xlu0.b32.cont [2/16] %v15, 128
  %45 = vxpose.xlu0.b32.cont [3/16] %v16, 128
  %46 = vxpose.xlu0.b32.cont [4/16] %v17, 128
  %47 = vxpose.xlu0.b32.cont [5/16] %v18, 128
  %48 = vxpose.xlu0.b32.cont [6/16] %v19, 128
  %49 = vxpose.xlu0.b32.cont [7/16] %v20, 128
  %50 = vxpose.xlu0.b32.cont [8/16] %v21, 128
  %51 = vxpose.xlu0.b32.cont [9/16] %v22, 128
  %52 = vxpose.xlu0.b32.cont [10/16] %v23, 128
  %53 = vxpose.xlu0.b32.cont [11/16] %v24, 128
  %54 = vxpose.xlu0.b32.cont [12/16] %v25, 128
  %55 = vxpose.xlu0.b32.cont [13/16] %v26, 128
  %56 = vxpose.xlu0.b32.cont [14/16] %v27, 128
  %57 = vxpose.xlu0.b32.cont [15/16] %v28, 128
  %58 = vxpose.xlu0.b32.end [16/16] %v29, 128
  %v59 = vpop.trf.xlu0
  %v60 = vpop.trf.xlu0
  %v61 = vpop.trf.xlu0
  %v62 = vpop.trf.xlu0
  %v63 = vpop.trf.xlu0
  %v64 = vpop.trf.xlu0
  %v65 = vpop.trf.xlu0
  %v66 = vpop.trf.xlu0
  %v67 = vpop.trf.xlu0
  %v68 = vpop.trf.xlu0
  %v69 = vpop.trf.xlu0
  %v70 = vpop.trf.xlu0
  %v71 = vpop.trf.xlu0
  %v72 = vpop.trf.xlu0
  %v73 = vpop.trf.xlu0
  %v74 = vpop.trf.xlu0
  %75 = vxpose.xlu0.b32.start [1/16] %v30, 128
  %76 = vxpose.xlu0.b32.cont [2/16] %v31, 128
  %77 = vxpose.xlu0.b32.cont [3/16] %v32, 128
  %78 = vxpose.xlu0.b32.cont [4/16] %v33, 128
  %79 = vxpose.xlu0.b32.cont [5/16] %v34, 128
  %80 = vxpose.xlu0.b32.cont [6/16] %v35, 128
  %81 = vxpose.xlu0.b32.cont [7/16] %v36, 128
  %82 = vxpose.xlu0.b32.cont [8/16] %v37, 128
  %83 = vxpose.xlu0.b32.cont [9/16] %v38, 128
  %84 = vxpose.xlu0.b32.cont [10/16] %v39, 128
  %85 = vxpose.xlu0.b32.cont [11/16] %v40, 128
  %86 = vxpose.xlu0.b32.cont [12/16] %v41, 128
  %87 = vxpose.xlu0.b32.cont [13/16] %v42, 128
  %88 = vxpose.xlu0.b32.cont [14/16] 0.0, 128
  %89 = vxpose.xlu0.b32.cont [15/16] 0.0, 128
  %90 = vxpose.xlu0.b32.end [16/16] 0.0, 128
  %v91 = vpop.trf.xlu0
  %v92 = vpop.trf.xlu0
  %v93 = vpop.trf.xlu0
  %v94 = vpop.trf.xlu0
  %v95 = vpop.trf.xlu0
  %v96 = vpop.trf.xlu0
  %v97 = vpop.trf.xlu0
  %v98 = vpop.trf.xlu0
  %v99 = vpop.trf.xlu0
  %v100 = vpop.trf.xlu0
  %v101 = vpop.trf.xlu0
  %v102 = vpop.trf.xlu0
  %v103 = vpop.trf.xlu0
  %v104 = vpop.trf.xlu0
  %v105 = vpop.trf.xlu0
  %v106 = vpop.trf.xlu0
  %v107 = vadd.f32 %v59, %v60
  %v108 = vadd.f32 %v107, %v61
  %v109 = vadd.f32 %v108, %v62
  %v110 = vadd.f32 %v109, %v63
  %v111 = vadd.f32 %v110, %v64
  %vm112 = vcmask 1040384
  %v113 = vsel %vm112, %v65, 0.0
  %v114 = vadd.f32 %v111, %v113
  %v115 = vrot.slane %v114, 4
  %v116 = vadd.f32 %v114, %v115
  %v117 = vrot.slane %v116, 2
  %v118 = vadd.f32 %v116, %v117
  %v119 = vrot.slane %v118, 1
  %v120 = vadd.f32 %v118, %v119
  %vm121 = vcmask 850944
  %v122 = vsel %vm121, %v91, 0.0
  %v123 = vsel %vm121, %v92, 0.0
  %v124 = vadd.f32 %v122, %v123
  %v125 = vsel %vm121, %v93, 0.0
  %v126 = vadd.f32 %v124, %v125
  %v127 = vsel %vm121, %v94, 0.0
  %v128 = vadd.f32 %v126, %v127
  %v129 = vsel %vm121, %v95, 0.0
  %v130 = vadd.f32 %v128, %v129
  %v131 = vsel %vm121, %v96, 0.0
  %v132 = vadd.f32 %v130, %v131
  %vm133 = vcmask 843776
  %v134 = vsel %vm133, %v97, 0.0
  %v135 = vadd.f32 %v132, %v134
  %v136 = vrot.slane %v135, 4
  %v137 = vadd.f32 %v135, %v136
  %v138 = vrot.slane %v137, 2
  %v139 = vadd.f32 %v137, %v138
  %v140 = vrot.slane %v139, 1
  %v141 = vadd.f32 %v139, %v140
  %v142 = vmul.f32 %v120, 0.020408163
  %v143 = vmul.f32 %v141, 0.020408163
  %v144 = vsub.f32 %v59, %v142
  %v145 = vsub.f32 %v91, %v143
  %v146 = vsub.f32 %v60, %v142
  %v147 = vsub.f32 %v92, %v143
  %v148 = vsub.f32 %v61, %v142
  %v149 = vsub.f32 %v93, %v143
  %v150 = vsub.f32 %v62, %v142
  %v151 = vsub.f32 %v94, %v143
  %v152 = vsub.f32 %v63, %v142
  %v153 = vsub.f32 %v95, %v143
  %v154 = vsub.f32 %v64, %v142
  %v155 = vsub.f32 %v96, %v143
  %v156 = vsub.f32 %v65, %v142
  %v157 = vsub.f32 %v97, %v143
  %v158 = vmul.f32 %v144, %v144
  %v159 = vmul.f32 %v145, %v145
  %v160 = vmul.f32 %v146, %v146
  %v161 = vmul.f32 %v147, %v147
  %v162 = vmul.f32 %v148, %v148
  %v163 = vmul.f32 %v149, %v149
  %v164 = vmul.f32 %v150, %v150
  %v165 = vmul.f32 %v151, %v151
  %v166 = vmul.f32 %v152, %v152
  %v167 = vmul.f32 %v153, %v153
  %v168 = vmul.f32 %v154, %v154
  %v169 = vmul.f32 %v155, %v155
  %v170 = vmul.f32 %v156, %v156
  %v171 = vmul.f32 %v157, %v157
  %v172 = vadd.f32 %v158, %v160
  %v173 = vadd.f32 %v172, %v162
  %v174 = vadd.f32 %v173, %v164
  %v175 = vadd.f32 %v174, %v166
  %v176 = vadd.f32 %v175, %v168
  %v177 = vsel %vm112, %v170, 0.0
  %v178 = vadd.f32 %v176, %v177
  %v179 = vrot.slane %v178, 4
  %v180 = vadd.f32 %v178, %v179
  %v181 = vrot.slane %v180, 2
  %v182 = vadd.f32 %v180, %v181
  %v183 = vrot.slane %v182, 1
  %v184 = vadd.f32 %v182, %v183
  %v185 = vsel %vm121, %v159, 0.0
  %v186 = vsel %vm121, %v161, 0.0
  %v187 = vadd.f32 %v185, %v186
  %v188 = vsel %vm121, %v163, 0.0
  %v189 = vadd.f32 %v187, %v188
  %v190 = vsel %vm121, %v165, 0.0
  %v191 = vadd.f32 %v189, %v190
  %v192 = vsel %vm121, %v167, 0.0
  %v193 = vadd.f32 %v191, %v192
  %v194 = vsel %vm121, %v169, 0.0
  %v195 = vadd.f32 %v193, %v194
  %v196 = vsel %vm133, %v171, 0.0
  %v197 = vadd.f32 %v195, %v196
  %v198 = vrot.slane %v197, 4
  %v199 = vadd.f32 %v197, %v198
  %v200 = vrot.slane %v199, 2
  %v201 = vadd.f32 %v199, %v200
  %v202 = vrot.slane %v201, 1
  %v203 = vadd.f32 %v201, %v202
  %v204 = vmul.f32 %v184, 0.020408163
  %v205 = vmul.f32 %v203, 0.020408163
  %v206 = vadd.f32 %v204, 1e-05
  %v207 = vadd.f32 %v205, 1e-05
  %v208 = vrsqrt.pop %v206
  %v209 = vmul.f32 %v208, %v206
  %v210 = vmul.f32 %v209, %v208
  %v211 = vmul.f32 0.5, %v210
  %v212 = vsub.f32 1.5, %v211
  %v213 = vmul.f32 %v208, %v212
  %vm214 = vweird.f32 %v206
  %vm215 = vweird.f32 %v208
  %vm216 = vmor %vm214, %vm215
  %v217 = vsel %vm216, %v208, %v213
  %v218 = vrsqrt.pop %v207
  %v219 = vmul.f32 %v218, %v207
  %v220 = vmul.f32 %v219, %v218
  %v221 = vmul.f32 0.5, %v220
  %v222 = vsub.f32 1.5, %v221
  %v223 = vmul.f32 %v218, %v222
  %vm224 = vweird.f32 %v207
  %vm225 = vweird.f32 %v218
  %vm226 = vmor %vm224, %vm225
  %v227 = vsel %vm226, %v218, %v223
  %v228 = vld [vmem:[%s1] sm:$0x3]
  %v231 = vrot.slane %v227, 7
  %v232 = vsel %vm112, %v217, %v231
  %v234 = vmul.f32 %v228, %v232
  %v235 = vld [vmem:[%s2] sm:$0x3]
  %v237 = vperm.slane %v234, 0
  %v238 = vperm.slane %v234, 1
  %v241 = vmul.f32 %v142, %v237
  %v242 = vmul.f32 %v143, %v238
  %v245 = vrot.slane %v242, 7
  %v246 = vsel %vm112, %v241, %v245
  %v248 = vsub.f32 %v235, %v246
  %v249 = vmul.f32 %v59, %v237
  %v250 = vmul.f32 %v91, %v238
  %v251 = vmul.f32 %v60, %v237
  %v252 = vmul.f32 %v92, %v238
  %v253 = vmul.f32 %v61, %v237
  %v254 = vmul.f32 %v93, %v238
  %v255 = vmul.f32 %v62, %v237
  %v256 = vmul.f32 %v94, %v238
  %v257 = vmul.f32 %v63, %v237
  %v258 = vmul.f32 %v95, %v238
  %v259 = vmul.f32 %v64, %v237
  %v260 = vmul.f32 %v96, %v238
  %v261 = vmul.f32 %v65, %v237
  %v262 = vmul.f32 %v97, %v238
  %v264 = vperm.slane %v248, 0
  %v265 = vperm.slane %v248, 1
  %v268 = vadd.f32 %v249, %v264
  %v269 = vadd.f32 %v250, %v265
  %v270 = vadd.f32 %v251, %v264
  %v271 = vadd.f32 %v252, %v265
  %v272 = vadd.f32 %v253, %v264
  %v273 = vadd.f32 %v254, %v265
  %v274 = vadd.f32 %v255, %v264
  %v275 = vadd.f32 %v256, %v265
  %v276 = vadd.f32 %v257, %v264
  %v277 = vadd.f32 %v258, %v265
  %v278 = vadd.f32 %v259, %v264
  %v279 = vadd.f32 %v260, %v265
  %v280 = vadd.f32 %v261, %v264
  %v281 = vadd.f32 %v262, %v265
  %282 = vxpose.xlu0.b32.start [1/16] %v268, 128
  %283 = vxpose.xlu0.b32.cont [2/16] %v270, 128
  %284 = vxpose.xlu0.b32.cont [3/16] %v272, 128
  %285 = vxpose.xlu0.b32.cont [4/16] %v274, 128
  %286 = vxpose.xlu0.b32.cont [5/16] %v276, 128
  %287 = vxpose.xlu0.b32.cont [6/16] %v278, 128
  %288 = vxpose.xlu0.b32.cont [7/16] %v280, 128
  %289 = vxpose.xlu0.b32.cont [8/16] 0.0, 128
  %290 = vxpose.xlu0.b32.cont [9/16] 0.0, 128
  %291 = vxpose.xlu0.b32.cont [10/16] 0.0, 128
  %292 = vxpose.xlu0.b32.cont [11/16] 0.0, 128
  %293 = vxpose.xlu0.b32.cont [12/16] 0.0, 128
  %294 = vxpose.xlu0.b32.cont [13/16] 0.0, 128
  %295 = vxpose.xlu0.b32.cont [14/16] 0.0, 128
  %296 = vxpose.xlu0.b32.cont [15/16] 0.0, 128
  %297 = vxpose.xlu0.b32.end [16/16] 0.0, 128
  %v298 = vpop.trf.xlu0
  %v299 = vpop.trf.xlu0
  %v300 = vpop.trf.xlu0
  %v301 = vpop.trf.xlu0
  %v302 = vpop.trf.xlu0
  %v303 = vpop.trf.xlu0
  %v304 = vpop.trf.xlu0
  %v305 = vpop.trf.xlu0
  %v306 = vpop.trf.xlu0
  %v307 = vpop.trf.xlu0
  %v308 = vpop.trf.xlu0
  %v309 = vpop.trf.xlu0
  %v310 = vpop.trf.xlu0
  %v311 = vpop.trf.xlu0
  %v312 = vpop.trf.xlu0
  %v313 = vpop.trf.xlu0
  %314 = vxpose.xlu0.b32.start [1/16] %v269, 128
  %315 = vxpose.xlu0.b32.cont [2/16] %v271, 128
  %316 = vxpose.xlu0.b32.cont [3/16] %v273, 128
  %317 = vxpose.xlu0.b32.cont [4/16] %v275, 128
  %318 = vxpose.xlu0.b32.cont [5/16] %v277, 128
  %319 = vxpose.xlu0.b32.cont [6/16] %v279, 128
  %320 = vxpose.xlu0.b32.cont [7/16] %v281, 128
  %321 = vxpose.xlu0.b32.cont [8/16] 0.0, 128
  %322 = vxpose.xlu0.b32.cont [9/16] 0.0, 128
  %323 = vxpose.xlu0.b32.cont [10/16] 0.0, 128
  %324 = vxpose.xlu0.b32.cont [11/16] 0.0, 128
  %325 = vxpose.xlu0.b32.cont [12/16] 0.0, 128
  %326 = vxpose.xlu0.b32.cont [13/16] 0.0, 128
  %327 = vxpose.xlu0.b32.cont [14/16] 0.0, 128
  %328 = vxpose.xlu0.b32.cont [15/16] 0.0, 128
  %329 = vxpose.xlu0.b32.end [16/16] 0.0, 128
  %v330 = vpop.trf.xlu0
  %v331 = vpop.trf.xlu0
  %v332 = vpop.trf.xlu0
  %v333 = vpop.trf.xlu0
  %v334 = vpop.trf.xlu0
  %v335 = vpop.trf.xlu0
  %v336 = vpop.trf.xlu0
  %v337 = vpop.trf.xlu0
  %v338 = vpop.trf.xlu0
  %v339 = vpop.trf.xlu0
  %v340 = vpop.trf.xlu0
  %v341 = vpop.trf.xlu0
  %v342 = vpop.trf.xlu0
  %v343 = vpop.trf.xlu0
  %v344 = vpop.trf.xlu0
  %v345 = vpop.trf.xlu0
  %vm346 = vcmask 400384
  %347 = vst.msk [vmem:[%s3] sm:$0xff] %vm346, %v298
  %348 = vst.msk [vmem:[%s3 + $0x8] sm:$0xff] %vm346, %v299
  %349 = vst.msk [vmem:[%s3 + $0x10] sm:$0xff] %vm346, %v300
  %350 = vst.msk [vmem:[%s3 + $0x18] sm:$0xff] %vm346, %v301
  %351 = vst.msk [vmem:[%s3 + $0x20] sm:$0xff] %vm346, %v302
  %352 = vst.msk [vmem:[%s3 + $0x28] sm:$0xff] %vm346, %v303
  %353 = vst.msk [vmem:[%s3 + $0x30] sm:$0xff] %vm346, %v304
  %354 = vst.msk [vmem:[%s3 + $0x38] sm:$0xff] %vm346, %v305
  %355 = vst.msk [vmem:[%s3 + $0x40] sm:$0xff] %vm346, %v306
  %356 = vst.msk [vmem:[%s3 + $0x48] sm:$0xff] %vm346, %v307
  %357 = vst.msk [vmem:[%s3 + $0x50] sm:$0xff] %vm346, %v308
  %358 = vst.msk [vmem:[%s3 + $0x58] sm:$0xff] %vm346, %v309
  %359 = vst.msk [vmem:[%s3 + $0x60] sm:$0xff] %vm346, %v310
  %360 = vst.msk [vmem:[%s3 + $0x68] sm:$0xff] %vm346, %v311
  %361 = vst.msk [vmem:[%s3 + $0x70] sm:$0xff] %vm346, %v312
  %362 = vst.msk [vmem:[%s3 + $0x78] sm:$0xff] %vm346, %v313
  %363 = vst.msk [vmem:[%s3 + $0x80] sm:$0xff] %vm346, %v330
  %364 = vst.msk [vmem:[%s3 + $0x88] sm:$0xff] %vm346, %v331
  %365 = vst.msk [vmem:[%s3 + $0x90] sm:$0xff] %vm346, %v332
  %366 = vst.msk [vmem:[%s3 + $0x98] sm:$0xff] %vm346, %v333
  %367 = vst.msk [vmem:[%s3 + $0xa0] sm:$0xff] %vm346, %v334
  %368 = vst.msk [vmem:[%s3 + $0xa8] sm:$0xff] %vm346, %v335
  %369 = vst.msk [vmem:[%s3 + $0xb0] sm:$0xff] %vm346, %v336
  %370 = vst.msk [vmem:[%s3 + $0xb8] sm:$0xff] %vm346, %v337
  %371 = vst.msk [vmem:[%s3 + $0xc0] sm:$0xff] %vm346, %v338
  %372 = vst.msk [vmem:[%s3 + $0xc8] sm:$0xff] %vm346, %v339
  %373 = vst.msk [vmem:[%s3 + $0xd0] sm:$0xff] %vm346, %v340
  %374 = vst.msk [vmem:[%s3 + $0xd8] sm:$0xff] %vm346, %v341
  %375 = vst.msk [vmem:[%s3 + $0xe0] sm:$0xff] %vm346, %v342
  // Predicated region
  $region14: #{tpu_custom_call.1} parent=0 // pred_check
    _
  $region15: #{tpu_custom_call.1} parent=0 // pred_check_branch
    %377 = sbr.rel (0) target = $region17
  $region16: #{tpu_custom_call.1} parent=0 // pred_region
    _
  $region17: #{tpu_custom_call.1} parent=0 // pred_fallthru
    _
  // Predicated region
  $region18: #{tpu_custom_call.1} parent=0 // pred_check
    _
  $region19: #{tpu_custom_call.1} parent=0 // pred_check_branch
    %379 = sbr.rel (0) target = $region21
  $region20: #{tpu_custom_call.1} parent=0 // pred_region
    _
  $region21: #{tpu_custom_call.1} parent=0 // pred_fallthru
    _

</llo_original>
